<compile_context>
chip_gen: v7x
topology: tpu7x:2x2x1
jax: 0.10.0
libtpu: 0.0.40
codegen_flags: <defaults>
</compile_context>

<pallas_src>
import functools

import jax
import jax.numpy as jnp
from jax.experimental import pallas as pl
from jax.experimental.pallas import tpu as pltpu


# --------------------------------------------------------------------------- #
# Kernels
# --------------------------------------------------------------------------- #
def _rmsnorm_kernel(x_ref, w_ref, o_ref, *, eps):
    # x_ref: (tm, H) tile; w_ref: (1, H) f32 weight (resident); o_ref: (tm, H)
    x = x_ref[...].astype(jnp.float32)
    ms = jnp.mean(x * x, axis=-1, keepdims=True)       # (tm, 1), XLU reduce
    inv = jax.lax.rsqrt(ms + eps)                       # EUP
    # TODO(synk): on v7x, if the bundle dump shows XLU binding for large H,
    # compute the row-sum as jnp.dot(x*x, ones(H,1)) on the idle MXU instead.
    o_ref[...] = (x * inv * w_ref[...]).astype(o_ref.dtype)


def _rmsnorm_kernel_noweight(x_ref, o_ref, *, eps):
    x = x_ref[...].astype(jnp.float32)
    ms = jnp.mean(x * x, axis=-1, keepdims=True)
    o_ref[...] = (x * jax.lax.rsqrt(ms + eps)).astype(o_ref.dtype)


# --------------------------------------------------------------------------- #
# Tile-size heuristics
# --------------------------------------------------------------------------- #
def _sublane_granularity(dtype):
    # minimal row-tile multiple for a given dtype (packed sublanes)
    return {4: 8, 2: 16, 1: 32}.get(jnp.dtype(dtype).itemsize, 8)


def _tpu_params():
    """(vmem_capacity_bytes, tensorcores_per_chip) with defensive fallbacks."""
    vmem = None
    cores = None
    try:
        info = pltpu.get_tpu_info()
        v = int(getattr(info, "vmem_capacity_bytes", 0) or 0)
        vmem = v if v > 0 else None
        for name in ("num_cores", "core_count", "tensorcore_count", "num_tensorcores"):
            c = getattr(info, name, None)
            if isinstance(c, int) and c > 0:
                cores = c
                break
    except Exception:
        pass
    if vmem is None:
        # chip-version-aware-ish fallback: assume the 128 MiB generations
        # (v5e/v6e); a 64 MiB assumption would silently halve tiles there.
        vmem = 128 * 1024 * 1024
    if cores is None:
        # 64 MiB per-TC VMEM is the v7x signature (2 TCs/chip); else single TC.
        cores = 2 if vmem <= 64 * 1024 * 1024 else 1
    return vmem, cores


def _choose_row_tile(rows, H, dtype_in, dtype_out, vmem_bytes, num_cores):
    """Largest row tile sized by bytes (~16 MiB in+out per block) within VMEM."""
    gran = max(_sublane_granularity(dtype_in), _sublane_granularity(dtype_out))
    bytes_per_row = H * (jnp.dtype(dtype_in).itemsize + jnp.dtype(dtype_out).itemsize)
    target_block_bytes = 16 << 20                       # ~16 MiB of in+out per block
    budget_block_bytes = (int(vmem_bytes * 0.7)) // 2   # /2: double-buffered tiles
    block_bytes = max(1, min(target_block_bytes, budget_block_bytes))
    row_tile = max(gran, (block_bytes // max(1, bytes_per_row)) // gran * gran)

    if row_tile >= rows:
        # Single block covering the full row extent (exempt from granularity).
        return rows

    # Only shrink for multi-step megacore splitting on multi-TC chips (v7x).
    if num_cores >= 2:
        min_steps = 2 * num_cores
        while row_tile > gran and pl.cdiv(rows, row_tile) < min_steps:
            row_tile = max(gran, ((row_tile // 2) // gran) * gran)
    return row_tile


# --------------------------------------------------------------------------- #
# Wrapper
# --------------------------------------------------------------------------- #
def lp_rms_norm(x, weight=None, eps=1e-05, *, row_tile=None):
    """LPRMSNorm forward. x: (..., H), weight: (H,) or None. Same shape/dtype as x.

    weight=None skips the gain multiply entirely (identical to the module's
    ones-initialized weight, and to weight=False in __init__).
    """
    orig_shape = x.shape
    orig_dtype = x.dtype
    H = orig_shape[-1]
    x2d = x.reshape(-1, H)
    rows = x2d.shape[0]

    vmem, cores = _tpu_params()
    if row_tile is None:
        row_tile = _choose_row_tile(rows, H, x2d.dtype, orig_dtype, vmem, cores)
    row_tile = int(min(row_tile, rows))

    grid = (pl.cdiv(rows, row_tile),)

    # Tight scoped-VMEM limit: double-buffered in+out tiles + resident weight,
    # plus a few MiB of slack; capped well below the physical ceiling.
    in_itm = jnp.dtype(x2d.dtype).itemsize
    out_itm = jnp.dtype(orig_dtype).itemsize
    need = 2 * row_tile * H * (in_itm + out_itm) + 2 * H * 4
    vmem_limit = int(min(int(vmem * 0.85), max(32 << 20, need + (4 << 20))))

    if weight is None:
        kernel = functools.partial(_rmsnorm_kernel_noweight, eps=eps)
        in_specs = [pl.BlockSpec((row_tile, H), lambda i: (i, 0))]
        operands = (x2d,)
    else:
        # Pre-cast the weight to f32 in the wrapper (one-time DMA; no per-step cast).
        w2d = jnp.asarray(weight).astype(jnp.float32).reshape(1, H)
        kernel = functools.partial(_rmsnorm_kernel, eps=eps)
        in_specs = [
            pl.BlockSpec((row_tile, H), lambda i: (i, 0)),
            pl.BlockSpec((1, H), lambda i: (0, 0)),      # weight held resident
        ]
        operands = (x2d, w2d)

    out = pl.pallas_call(
        kernel,
        out_shape=jax.ShapeDtypeStruct((rows, H), orig_dtype),
        grid_spec=pltpu.PrefetchScalarGridSpec(
            num_scalar_prefetch=0,
            grid=grid,
            in_specs=in_specs,
            out_specs=pl.BlockSpec((row_tile, H), lambda i: (i, 0)),
        ),
        compiler_params=pltpu.CompilerParams(
            dimension_semantics=("parallel",),
            vmem_limit_bytes=vmem_limit,
        ),
    )(*operands)

    return out.reshape(orig_shape)


# --------------------------------------------------------------------------- #
# Reference + smoke test
# --------------------------------------------------------------------------- #
def _reference(x, weight=None, eps=1e-05):
    xf = x.astype(jnp.float32)
    out = xf * jax.lax.rsqrt(jnp.mean(xf * xf, axis=-1, keepdims=True) + eps)
    if weight is not None:
        out = out * weight.astype(jnp.float32)
    return out.astype(x.dtype)


if __name__ == "__main__":
    key = jax.random.PRNGKey(0)
    k1, k2, k3 = jax.random.split(key, 3)
    hidden = 128  # normalized_shape; multiple of 128 -> lane-dense stores

    # Case 1: f32 activations, explicit ones weight, rows divide the tile.
    x1 = jax.random.normal(k1, (2, 8, hidden), dtype=jnp.float32)
    w1 = jnp.ones((hidden,), dtype=jnp.float32)
    out1 = jax.block_until_ready(lp_rms_norm(x1, w1, eps=1e-05))
    ref1 = _reference(x1, w1, eps=1e-05)
    assert out1.shape == x1.shape and out1.dtype == x1.dtype
    assert jnp.allclose(out1, ref1, atol=1e-5, rtol=1e-5)

    # Case 2: bf16 activations, row count (15) not a multiple of the sublane
    # granularity -> single full-extent block; bf16 stays bf16 across HBM.
    x2 = (jax.random.normal(k2, (3, 5, hidden), dtype=jnp.float32) * 2.0).astype(jnp.bfloat16)
    w2 = jnp.ones((hidden,), dtype=jnp.bfloat16)
    out2 = jax.block_until_ready(lp_rms_norm(x2, w2, eps=1e-05))
    ref2 = _reference(x2, w2, eps=1e-05)
    assert out2.shape == x2.shape and out2.dtype == x2.dtype
    assert jnp.allclose(out2.astype(jnp.float32), ref2.astype(jnp.float32),
                        atol=2e-2, rtol=2e-2)

    # Case 3: weight=None specialization + a genuine partial final block
    # (40 rows, forced 16-row tile -> grid of 3 with clipped last write).
    x3 = jax.random.normal(k3, (5, 8, hidden), dtype=jnp.float32)
    out3 = jax.block_until_ready(lp_rms_norm(x3, None, eps=1e-05, row_tile=16))
    ref3 = _reference(x3, None, eps=1e-05)
    assert out3.shape == x3.shape and out3.dtype == x3.dtype
    assert jnp.allclose(out3, ref3, atol=1e-5, rtol=1e-5)

    print("KERNEL_OK")
</pallas_src>

<mosaic_0001>
module attributes {stable_mosaic.version = 11 : i64} {
  func.func @_rmsnorm_kernel(%arg0: i32, %arg1: memref<16x128xf32, #tpu.memory_space<vmem>>, %arg2: memref<1x128xf32, #tpu.memory_space<vmem>>, %arg3: memref<16x128xf32, #tpu.memory_space<vmem>>) attributes {dimension_semantics = [#tpu.dimension_semantics<parallel>], iteration_bounds = array<i64: 1>, scalar_prefetch = 0 : i64, scratch_operands = 0 : i64, tpu.core_type = #tpu.core_type<tc>, window_params = [{transform_indices = @transform_0, window_bounds = array<i64: 16, 128>}, {pipeline_mode = #tpu.pipeline_mode<synchronous>, transform_indices = @transform_1, window_bounds = array<i64: 1, 128>}, {transform_indices = @transform_2, window_bounds = array<i64: 16, 128>}]} {
    %c0 = arith.constant 0 : index
    %c0_0 = arith.constant 0 : index
    %0 = vector.load %arg1[%c0, %c0_0] : memref<16x128xf32, #tpu.memory_space<vmem>>, vector<16x128xf32>
    %1 = arith.mulf %0, %0 : vector<16x128xf32>
    %cst = arith.constant dense<0.000000e+00> : vector<16xf32>
    %2 = vector.multi_reduction <add>, %1, %cst [1] : vector<16x128xf32> to vector<16xf32>
    %3 = vector.shape_cast %2 : vector<16xf32> to vector<16x1xf32>
    %cst_1 = arith.constant 1.280000e+02 : f32
    %4 = vector.broadcast %cst_1 : f32 to vector<16x1xf32>
    %5 = arith.divf %3, %4 : vector<16x1xf32>
    %cst_2 = arith.constant 9.99999974E-6 : f32
    %6 = vector.broadcast %cst_2 : f32 to vector<16x1xf32>
    %7 = arith.addf %5, %6 : vector<16x1xf32>
    %8 = math.rsqrt %7 : vector<16x1xf32>
    %9 = vector.broadcast %8 : vector<16x1xf32> to vector<16x128xf32>
    %10 = arith.mulf %0, %9 : vector<16x128xf32>
    %c0_3 = arith.constant 0 : index
    %c0_4 = arith.constant 0 : index
    %11 = vector.load %arg2[%c0_3, %c0_4] : memref<1x128xf32, #tpu.memory_space<vmem>>, vector<1x128xf32>
    %12 = vector.broadcast %11 : vector<1x128xf32> to vector<16x128xf32>
    %13 = arith.mulf %10, %12 : vector<16x128xf32>
    %c0_5 = arith.constant 0 : index
    %c0_6 = arith.constant 0 : index
    %14 = vector.load %arg3[%c0_5, %c0_6] : memref<16x128xf32, #tpu.memory_space<vmem>>, vector<16x128xf32>
    tpu.vector_store %arg3[%c0_5, %c0_6], %13 {strides = array<i32>} : memref<16x128xf32, #tpu.memory_space<vmem>>, vector<16x128xf32>,
    return
  }
  func.func @transform_0(%arg0: i32) -> (i32, i32) {
    %c0_i32 = arith.constant 0 : i32
    %c0_i32_0 = arith.constant 0 : i32
    return %arg0, %c0_i32 : i32, i32
  }
  func.func @transform_1(%arg0: i32) -> (i32, i32) {
    %c0_i32 = arith.constant 0 : i32
    %c0_i32_0 = arith.constant 0 : i32
    %c0_i32_1 = arith.constant 0 : i32
    return %c0_i32, %c0_i32_0 : i32, i32
  }
  func.func @transform_2(%arg0: i32) -> (i32, i32) {
    %c0_i32 = arith.constant 0 : i32
    %c0_i32_0 = arith.constant 0 : i32
    return %arg0, %c0_i32 : i32, i32
  }
}

</mosaic_0001>

<llo_original>
// kernel: tpu_custom_call.1
$region0: #{tpu_custom_call.1}
  #allocation0 [shape = 'u32[]', space=smem, size = 0x4, offset = 0x4, fixed_abs, tag = 'smem constant byte address 0x4 - core index']
  #allocation1 [shape = 'u32[144,128]{1,0:T(1,128)}', space=vmem, size = 0x12000, scoped, tag = 'internal scratch']
  %s0 = inlined_call_operand.hbm [shape: f32[16,128], index: 0, kind: input, shape index: {}]
  %s1 = inlined_call_operand.vmem [shape: f32[1,128], index: 1, kind: input, shape index: {}]
  %s2 = inlined_call_operand.hbm [shape: f32[16,128], index: 2, kind: output, shape index: {}]
  %s3 = sld [smem:[#allocation0]]
  $region22: #{tpu_custom_call.1} parent=0
    _
  %s5 = ssub.s32 1, %s3
  %s6 = scalar_select 0, %s5, %s3
  $region1: #{tpu_custom_call.1} parent=0
    #allocation2 [shape = 'u8[8192]{0}', space=vmem, size = 0x2000, scoped, tag = 'input window, operand 0, single buffered']
    #allocation3 [shape = 's32[1]{0}', space=sflag, size = 0x4, scoped, tag = 'scoped memory for tpu_custom_call.1']
    #allocation4 [shape = 's32[1]{0}', space=sflag, size = 0x4, scoped, tag = 'scoped memory for tpu_custom_call.1']
    #allocation5 [shape = 'u8[8192]{0}', space=vmem, size = 0x2000, scoped, tag = 'output window, operand 0, single buffered']
    %7 = vsyncpa [#allocation3], 0
    %8 = vsyncpa [#allocation4], 0
    // Predicated region
    $region2: #{tpu_custom_call.1} parent=1 // pred_check
      _
    $region3: #{tpu_custom_call.1} parent=1 // pred_check_branch
      %10 = sbr.rel (0) target = $region5
    $region4: #{tpu_custom_call.1} parent=1 // pred_region
      %s12 = ssub.s32 256, 256
      %13 = vsyncadd [#allocation3], %s12
      %s14 = sshll.u32 [#allocation2], 4
      %s15 = int_to_ptr.vmem [resolvable:$true] %s14
      %20 = dma.hbm_to_vmem [thread:$0]  %s0, 256, %s15, [#allocation3], 128, 128, 8
    $region5: #{tpu_custom_call.1} parent=1 // pred_fallthru
      _
    // Predicated region
    $region6: #{tpu_custom_call.1} parent=1 // pred_check
      _
    $region7: #{tpu_custom_call.1} parent=1 // pred_check_branch
      %22 = sbr.rel (0) target = $region9
    $region8: #{tpu_custom_call.1} parent=1 // pred_region
      _
    $region9: #{tpu_custom_call.1} parent=1 // pred_fallthru
      _
    // Predicated region
    $region10: #{tpu_custom_call.1} parent=1 // pred_check
      _
    $region11: #{tpu_custom_call.1} parent=1 // pred_check_branch
      %24 = sbr.rel (0) target = $region13
    $region12: #{tpu_custom_call.1} parent=1 // pred_region
      %25 = dma.done [#allocation3], 256
    $region13: #{tpu_custom_call.1} parent=1 // pred_fallthru
      _
    %v26 = vld [vmem:[#allocation2] sm:$0xff]
    %v27 = vld [vmem:[#allocation2 + $0x8] sm:$0xff]
    %v28 = vmul.f32 %v26, %v26
    %v29 = vmul.f32 %v27, %v27
    %30 = vadd.xlane.f32.xlu0 %v28
    %v31 = vpop.xlane.xlu0 %30
    %32 = vadd.xlane.f32.xlu0 %v29
    %v33 = vpop.xlane.xlu0 %32
    %v34 = vrcp.pop 128.0
    %v35 = vmul.f32 %v31, %v34
    %v36 = vmul.f32 %v33, %v34
    %v37 = vadd.f32 %v35, 1e-05
    %v38 = vadd.f32 %v36, 1e-05
    %v39 = vrsqrt.pop %v37
    %v40 = vrsqrt.pop %v38
    %v41 = vmul.f32 %v26, %v39
    %v42 = vmul.f32 %v27, %v40
    %v43 = vld [vmem:[%s1] sm:$0x1]
    %v45 = vlaneseq
    %v46 = vshrl.u32 %v45, 7
    %v47 = vsub.s32 0, %v46
    %v48 = vrot.slane %v43, %v47
    %v50 = vmul.f32 %v41, %v48
    %v51 = vmul.f32 %v42, %v48
    %52 = vst [vmem:[#allocation5] sm:$0xff] %v50
    %53 = vst [vmem:[#allocation5 + $0x8] sm:$0xff] %v51
    // Predicated region
    $region14: #{tpu_custom_call.1} parent=1 // pred_check
      _
    $region15: #{tpu_custom_call.1} parent=1 // pred_check_branch
      %55 = sbr.rel (0) target = $region17
    $region16: #{tpu_custom_call.1} parent=1 // pred_region
      %s57 = ssub.s32 256, 256
      %58 = vsyncadd [#allocation4], %s57
      %s59 = sshll.u32 [#allocation5], 4
      %s60 = int_to_ptr.vmem [resolvable:$true] %s59
      %65 = dma.vmem_to_hbm [thread:$0]  %s60, 256, %s2, [#allocation4], 128, 128, 8
    $region17: #{tpu_custom_call.1} parent=1 // pred_fallthru
      _
    // Predicated region
    $region18: #{tpu_custom_call.1} parent=1 // pred_check
      _
    $region19: #{tpu_custom_call.1} parent=1 // pred_check_branch
      %67 = sbr.rel (0) target = $region21
    $region20: #{tpu_custom_call.1} parent=1 // pred_region
      %68 = dma.done [#allocation4], 256
    $region21: #{tpu_custom_call.1} parent=1 // pred_fallthru
      _
    %69 = vsyncpa [#allocation3], 1
    %70 = vsyncpa [#allocation4], 1

</llo_original>
